<compile_context>
chip_gen: v6e
topology: v6e:2x2x1
jax: 0.10.0
libtpu: 0.0.40
codegen_flags: <defaults>
</compile_context>

<pallas_src>
import functools
import math

import jax
import jax.numpy as jnp
from jax import lax
from jax.experimental import pallas as pl
from jax.experimental.pallas import tpu as pltpu


# ----------------------------------------------------------------------------
# Tiling helper
# ----------------------------------------------------------------------------
def _pick_tile(dim, pref, align):
    """Largest multiple of `align` that is <= pref and divides dim, else full dim."""
    if dim <= pref:
        return dim
    t = (pref // align) * align
    while t >= align:
        if dim % t == 0:
            return t
        t -= align
    return dim


# ----------------------------------------------------------------------------
# Projection kernels (x @ w^T, weight in (out, in) layout)
# ----------------------------------------------------------------------------
def _proj_kernel(x_ref, w_ref, o_ref, acc_ref):
    @pl.when(pl.program_id(2) == 0)
    def _init():
        acc_ref[...] = jnp.zeros_like(acc_ref)

    acc_ref[...] += lax.dot_general(
        x_ref[...], w_ref[...],
        dimension_numbers=(((1,), (1,)), ((), ())),  # contract K of x with K of w
        preferred_element_type=jnp.float32)

    @pl.when(pl.program_id(2) == pl.num_programs(2) - 1)
    def _finalize():
        o_ref[...] = acc_ref[...].astype(o_ref.dtype)


def _proj_rope_kernel(x_ref, w_ref, cos_ref, sin_ref, o_ref, acc_ref, *, half):
    @pl.when(pl.program_id(2) == 0)
    def _init():
        acc_ref[...] = jnp.zeros_like(acc_ref)

    acc_ref[...] += lax.dot_general(
        x_ref[...], w_ref[...],
        dimension_numbers=(((1,), (1,)), ((), ())),
        preferred_element_type=jnp.float32)

    @pl.when(pl.program_id(2) == pl.num_programs(2) - 1)
    def _finalize():
        acc = acc_ref[...]                                 # (tm, D) f32 — one head slab
        cos = cos_ref[...].astype(jnp.float32)
        sin = sin_ref[...].astype(jnp.float32)
        # rotate_half via an XLU lane roll instead of slice+concat on the VALU path.
        # NOTE: pltpu.roll requires a non-negative axis (axis=-1 raises).
        rolled = pltpu.roll(acc, shift=half, axis=acc.ndim - 1)   # [x2, x1]
        lane = lax.broadcasted_iota(jnp.int32, acc.shape, acc.ndim - 1)
        rotated = jnp.where(lane < half, -rolled, rolled)         # [-x2, x1]
        o_ref[...] = (acc * cos + rotated * sin).astype(o_ref.dtype)


def pallas_proj(x, w, *, block_m=256, block_n=256, block_k=512):
    """y = x @ w^T  with w stored PyTorch-style as (out, in)."""
    M, K = x.shape
    N, K2 = w.shape
    assert K == K2
    tm = _pick_tile(M, block_m, 8)
    tn = _pick_tile(N, block_n, 128)
    tk = _pick_tile(K, block_k, 128)
    grid = (M // tm, N // tn, K // tk)
    itemsize = x.dtype.itemsize
    return pl.pallas_call(
        _proj_kernel,
        out_shape=jax.ShapeDtypeStruct((M, N), x.dtype),
        grid=grid,
        in_specs=[
            pl.BlockSpec((tm, tk), lambda i, j, k: (i, k)),
            pl.BlockSpec((tn, tk), lambda i, j, k: (j, k)),
        ],
        out_specs=pl.BlockSpec((tm, tn), lambda i, j, k: (i, j)),
        scratch_shapes=[pltpu.VMEM((tm, tn), jnp.float32)],
        compiler_params=pltpu.CompilerParams(
            dimension_semantics=("parallel", "parallel", "arbitrary")),
        cost_estimate=pl.CostEstimate(
            flops=2 * M * N * K,
            transcendentals=0,
            bytes_accessed=(M * K + N * K + M * N) * itemsize),
    )(x, w)


def pallas_proj_rope(x, w, cos, sin, *, head_dim, block_m=256, block_k=512):
    """y = RoPE(x @ w^T)  — one N-tile per head (tn == head_dim), RoPE in epilogue."""
    M, K = x.shape
    N, K2 = w.shape
    D = head_dim
    assert K == K2 and N % D == 0
    assert D % 128 == 0, "head_dim must be a multiple of 128 for lane-block heads"
    tm = _pick_tile(M, block_m, 8)
    tk = _pick_tile(K, block_k, 128)
    tn = D
    grid = (M // tm, N // tn, K // tk)
    kernel = functools.partial(_proj_rope_kernel, half=D // 2)
    itemsize = x.dtype.itemsize
    return pl.pallas_call(
        kernel,
        out_shape=jax.ShapeDtypeStruct((M, N), x.dtype),
        grid=grid,
        in_specs=[
            pl.BlockSpec((tm, tk), lambda i, j, k: (i, k)),
            pl.BlockSpec((tn, tk), lambda i, j, k: (j, k)),
            pl.BlockSpec((tm, D), lambda i, j, k: (i, 0)),
            pl.BlockSpec((tm, D), lambda i, j, k: (i, 0)),
        ],
        out_specs=pl.BlockSpec((tm, tn), lambda i, j, k: (i, j)),
        scratch_shapes=[pltpu.VMEM((tm, tn), jnp.float32)],
        compiler_params=pltpu.CompilerParams(
            dimension_semantics=("parallel", "parallel", "arbitrary")),
        cost_estimate=pl.CostEstimate(
            flops=2 * M * N * K,
            transcendentals=0,
            bytes_accessed=(M * K + N * K + 2 * M * D + M * N) * itemsize),
    )(x, w, cos, sin)


# ----------------------------------------------------------------------------
# Flash attention kernel (causal, GQA, online softmax)
# ----------------------------------------------------------------------------
def _flash_attn_kernel(q_ref, k_ref, v_ref, o_ref, m_scr, l_scr, acc_scr,
                       *, scale, tq, tkv):
    qi = pl.program_id(2)
    ki = pl.program_id(3)
    n_kv = pl.num_programs(3)

    @pl.when(ki == 0)
    def _init():
        m_scr[...] = jnp.full(m_scr.shape, -1e30, dtype=jnp.float32)
        l_scr[...] = jnp.zeros(l_scr.shape, dtype=jnp.float32)
        acc_scr[...] = jnp.zeros(acc_scr.shape, dtype=jnp.float32)

    # Skip KV tiles that lie strictly above the causal diagonal for this Q tile.
    @pl.when(ki * tkv <= qi * tq + (tq - 1))
    def _compute():
        q = q_ref[0, :, :]                                  # (tq, D)
        k = k_ref[0, :, :]                                  # (tkv, D)
        s = lax.dot_general(
            q, k, dimension_numbers=(((1,), (1,)), ((), ())),
            preferred_element_type=jnp.float32) * scale     # (tq, tkv)

        # causal mask generated in-kernel (no (S,S) mask traffic from HBM)
        row = qi * tq + lax.broadcasted_iota(jnp.int32, (tq, tkv), 0)
        col = ki * tkv + lax.broadcasted_iota(jnp.int32, (tq, tkv), 1)
        s = jnp.where(row >= col, s, -1e30)

        m_prev = m_scr[...]                                 # (tq, 1)
        m_new = jnp.maximum(m_prev, jnp.max(s, axis=-1, keepdims=True))
        alpha = jnp.exp(m_prev - m_new)
        p = jnp.exp(s - m_new)                              # (tq, tkv)
        l_scr[...] = alpha * l_scr[...] + jnp.sum(p, axis=-1, keepdims=True)
        acc_scr[...] = alpha * acc_scr[...] + lax.dot_general(
            p.astype(v_ref.dtype), v_ref[0, :, :],
            dimension_numbers=(((1,), (0,)), ((), ())),
            preferred_element_type=jnp.float32)
        m_scr[...] = m_new

    @pl.when(ki == n_kv - 1)
    def _finalize():
        # Division runs once per output element in the epilogue (not the inner
        # loop); for bf16 production swap in pl.reciprocal(l, approx=True) — kept
        # exact here so the f32 verification tolerance holds.
        o_ref[0, :, :] = (acc_scr[...] / l_scr[...]).astype(o_ref.dtype)


def pallas_flash_attention(q, k, v, *, n_rep, head_dim,
                           block_q=128, block_kv=512):
    """q:(B,S,nH*D)  k,v:(B,S,nKV*D) -> (B,S,nH*D); causal, GQA via index_map."""
    B, S, QH = q.shape
    D = head_dim
    assert QH % D == 0 and D % 128 == 0
    nH = QH // D
    scale = 1.0 / math.sqrt(D)
    tq = _pick_tile(S, block_q, 8)
    tkv = _pick_tile(S, block_kv, 8)
    n_q = S // tq
    n_kv = S // tkv
    kernel = functools.partial(_flash_attn_kernel, scale=scale, tq=tq, tkv=tkv)
    itemsize = q.dtype.itemsize
    bytes_accessed = itemsize * (2 * q.size + (k.size + v.size) * n_rep * n_q)
    return pl.pallas_call(
        kernel,
        out_shape=jax.ShapeDtypeStruct((B, S, QH), q.dtype),
        grid=(B, nH, n_q, n_kv),
        in_specs=[
            pl.BlockSpec((1, tq, D), lambda b, h, qi, ki: (b, qi, h)),
            pl.BlockSpec((1, tkv, D), lambda b, h, qi, ki: (b, ki, h // n_rep)),
            pl.BlockSpec((1, tkv, D), lambda b, h, qi, ki: (b, ki, h // n_rep)),
        ],
        out_specs=pl.BlockSpec((1, tq, D), lambda b, h, qi, ki: (b, qi, h)),
        scratch_shapes=[
            pltpu.VMEM((tq, 1), jnp.float32),   # running max  m
            pltpu.VMEM((tq, 1), jnp.float32),   # running sum  l
            pltpu.VMEM((tq, D), jnp.float32),   # accumulator
        ],
        compiler_params=pltpu.CompilerParams(
            dimension_semantics=("parallel", "parallel", "parallel", "arbitrary")),
        cost_estimate=pl.CostEstimate(
            flops=4 * B * nH * S * S * D,
            transcendentals=B * nH * S * S,
            bytes_accessed=bytes_accessed),
    )(q, k, v)


# ----------------------------------------------------------------------------
# LlamaAttention forward (Pallas-backed)
# ----------------------------------------------------------------------------
def llama_attention_forward(params, hidden_states, attention_mask, position_ids, *,
                            num_heads, num_kv_heads, max_pos, rope_theta,
                            attn_block_q=128, attn_block_kv=512,
                            proj_block_m=256, proj_block_k=512):
    del attention_mask  # causal mask is generated inside the attention kernel
    B, S, H = hidden_states.shape
    D = H // num_heads
    n_rep = num_heads // num_kv_heads

    x2d = hidden_states.reshape(B * S, H)

    # Rotary tables (glue, matches LlamaRotaryEmbedding with no scaling)
    inv_freq = 1.0 / (rope_theta ** (jnp.arange(0, D, 2, dtype=jnp.float32) / D))
    t = jnp.arange(max_pos, dtype=jnp.float32)
    freqs = jnp.einsum("i,j->ij", t, inv_freq)          # (max_pos, D/2)
    emb = jnp.concatenate([freqs, freqs], axis=-1)      # (max_pos, D)
    pos = position_ids.reshape(-1)
    cos = jnp.take(jnp.cos(emb), pos, axis=0)           # (B*S, D)
    sin = jnp.take(jnp.sin(emb), pos, axis=0)           # (B*S, D)

    # Projections (weights consumed in (out, in) layout; RoPE fused for Q/K).
    q2d = pallas_proj_rope(x2d, params["wq"], cos, sin, head_dim=D,
                           block_m=proj_block_m, block_k=proj_block_k)
    k2d = pallas_proj_rope(x2d, params["wk"], cos, sin, head_dim=D,
                           block_m=proj_block_m, block_k=proj_block_k)
    v2d = pallas_proj(x2d, params["wv"],
                      block_m=proj_block_m, block_k=proj_block_k)

    q = q2d.reshape(B, S, num_heads * D)
    k = k2d.reshape(B, S, num_kv_heads * D)
    v = v2d.reshape(B, S, num_kv_heads * D)

    # Flash attention (causal mask in-kernel, GQA via BlockSpec lane-block index).
    attn = pallas_flash_attention(q, k, v, n_rep=n_rep, head_dim=D,
                                  block_q=attn_block_q, block_kv=attn_block_kv)

    out2d = pallas_proj(attn.reshape(B * S, H), params["wo"],
                        block_m=proj_block_m, block_k=proj_block_k)
    return out2d.reshape(B, S, H)


# ----------------------------------------------------------------------------
# Pure-JAX reference (mirrors the PyTorch forward) for verification
# ----------------------------------------------------------------------------
def reference_forward(params, hidden_states, attention_mask, position_ids,
                      *, num_heads, num_kv_heads, max_pos, rope_theta):
    B, S, H = hidden_states.shape
    D = H // num_heads
    n_rep = num_heads // num_kv_heads
    hp = jax.lax.Precision.HIGHEST

    q = jnp.einsum("bsh,oh->bso", hidden_states, params["wq"], precision=hp)
    k = jnp.einsum("bsh,oh->bso", hidden_states, params["wk"], precision=hp)
    v = jnp.einsum("bsh,oh->bso", hidden_states, params["wv"], precision=hp)
    q = q.reshape(B, S, num_heads, D).transpose(0, 2, 1, 3)
    k = k.reshape(B, S, num_kv_heads, D).transpose(0, 2, 1, 3)
    v = v.reshape(B, S, num_kv_heads, D).transpose(0, 2, 1, 3)

    inv_freq = 1.0 / (rope_theta ** (jnp.arange(0, D, 2, dtype=jnp.float32) / D))
    t = jnp.arange(max_pos, dtype=jnp.float32)
    freqs = jnp.einsum("i,j->ij", t, inv_freq)
    emb = jnp.concatenate([freqs, freqs], axis=-1)
    cos = jnp.take(jnp.cos(emb), position_ids, axis=0)[:, None]  # (B,1,S,D)
    sin = jnp.take(jnp.sin(emb), position_ids, axis=0)[:, None]

    def rotate_half(x):
        half = x.shape[-1] // 2
        return jnp.concatenate([-x[..., half:], x[..., :half]], axis=-1)

    q = q * cos + rotate_half(q) * sin
    k = k * cos + rotate_half(k) * sin

    k = jnp.repeat(k, n_rep, axis=1)
    v = jnp.repeat(v, n_rep, axis=1)

    scores = jnp.einsum("bhqd,bhkd->bhqk", q, k, precision=hp) / math.sqrt(D)
    scores = scores + attention_mask
    w = jax.nn.softmax(scores.astype(jnp.float32), axis=-1)
    attn = jnp.einsum("bhqk,bhkd->bhqd", w, v, precision=hp)
    attn = attn.transpose(0, 2, 1, 3).reshape(B, S, H)
    return jnp.einsum("bsh,oh->bso", attn, params["wo"], precision=hp)


# ----------------------------------------------------------------------------
if __name__ == "__main__":
    # Small Llama-like config: real Llama head_dim (128) so heads are lane-aligned.
    B, S = 2, 256
    hidden_size = 256
    num_heads = 2
    num_kv_heads = 1            # GQA: num_key_value_groups = 2
    head_dim = hidden_size // num_heads   # 128
    max_pos = 512
    rope_theta = 10000.0

    key = jax.random.PRNGKey(0)
    kx, kq, kk, kv, ko = jax.random.split(key, 5)

    hidden_states = jax.random.normal(kx, (B, S, hidden_size), jnp.float32)
    params = {
        "wq": 0.02 * jax.random.normal(kq, (num_heads * head_dim, hidden_size), jnp.float32),
        "wk": 0.02 * jax.random.normal(kk, (num_kv_heads * head_dim, hidden_size), jnp.float32),
        "wv": 0.02 * jax.random.normal(kv, (num_kv_heads * head_dim, hidden_size), jnp.float32),
        "wo": 0.02 * jax.random.normal(ko, (hidden_size, num_heads * head_dim), jnp.float32),
    }

    position_ids = jnp.broadcast_to(jnp.arange(S, dtype=jnp.int32), (B, S))
    causal = jnp.tril(jnp.ones((S, S), dtype=bool))
    attention_mask = jnp.where(causal, 0.0, -1e9).astype(jnp.float32)
    attention_mask = jnp.broadcast_to(attention_mask, (B, 1, S, S))

    # Small tile overrides so the test exercises multi-tile K-accumulation and the
    # multi-KV-tile online-softmax path (production defaults: 128 / 512 / 256 / 512).
    out = llama_attention_forward(
        params, hidden_states, attention_mask, position_ids,
        num_heads=num_heads, num_kv_heads=num_kv_heads,
        max_pos=max_pos, rope_theta=rope_theta,
        attn_block_q=64, attn_block_kv=64,
        proj_block_m=128, proj_block_k=128)
    out = jax.block_until_ready(out)

    ref = reference_forward(
        params, hidden_states, attention_mask, position_ids,
        num_heads=num_heads, num_kv_heads=num_kv_heads,
        max_pos=max_pos, rope_theta=rope_theta)
    ref = jax.block_until_ready(ref)

    assert out.shape == (B, S, hidden_size)
    max_err = float(jnp.max(jnp.abs(out - ref)))
    assert max_err < 5e-4, f"mismatch vs reference: {max_err}"
    print("KERNEL_OK")
</pallas_src>

<mosaic_0001>
module attributes {stable_mosaic.version = 11 : i64} {
  func.func @_proj_rope_kernel(%arg0: i32, %arg1: i32, %arg2: i32, %arg3: memref<128x128xf32, #tpu.memory_space<vmem>>, %arg4: memref<128x128xf32, #tpu.memory_space<vmem>>, %arg5: memref<128x128xf32, #tpu.memory_space<vmem>>, %arg6: memref<128x128xf32, #tpu.memory_space<vmem>>, %arg7: memref<128x128xf32, #tpu.memory_space<vmem>>, %arg8: memref<128x128xf32, #tpu.memory_space<vmem>>) attributes {dimension_semantics = [#tpu.dimension_semantics<parallel>, #tpu.dimension_semantics<parallel>, #tpu.dimension_semantics<arbitrary>], iteration_bounds = array<i64: 4, 2, 2>, scalar_prefetch = 0 : i64, scratch_operands = 1 : i64, tpu.core_type = #tpu.core_type<tc>, window_params = [{transform_indices = @transform_0, window_bounds = array<i64: 128, 128>}, {transform_indices = @transform_1, window_bounds = array<i64: 128, 128>}, {transform_indices = @transform_2, window_bounds = array<i64: 128, 128>}, {transform_indices = @transform_3, window_bounds = array<i64: 128, 128>}, {transform_indices = @transform_4, window_bounds = array<i64: 128, 128>}]} {
    %c0_i32 = arith.constant 0 : i32
    %0 = arith.cmpi eq, %arg2, %c0_i32 : i32
    %1 = arith.extui %0 : i1 to i32
    %c0_i32_0 = arith.constant 0 : i32
    %2 = arith.cmpi ne, %1, %c0_i32_0 : i32
    scf.if %2 {
      %cst_9 = arith.constant 0.000000e+00 : f32
      %12 = vector.broadcast %cst_9 : f32 to vector<128x128xf32>
      %c0_10 = arith.constant 0 : index
      %c0_11 = arith.constant 0 : index
      %13 = vector.load %arg8[%c0_10, %c0_11] : memref<128x128xf32, #tpu.memory_space<vmem>>, vector<128x128xf32>
      tpu.vector_store %arg8[%c0_10, %c0_11], %12 {strides = array<i32>} : memref<128x128xf32, #tpu.memory_space<vmem>>, vector<128x128xf32>,
    } else {
    }
    %c0 = arith.constant 0 : index
    %c0_1 = arith.constant 0 : index
    %3 = vector.load %arg8[%c0, %c0_1] : memref<128x128xf32, #tpu.memory_space<vmem>>, vector<128x128xf32>
    %c0_2 = arith.constant 0 : index
    %c0_3 = arith.constant 0 : index
    %4 = vector.load %arg3[%c0_2, %c0_3] : memref<128x128xf32, #tpu.memory_space<vmem>>, vector<128x128xf32>
    %c0_4 = arith.constant 0 : index
    %c0_5 = arith.constant 0 : index
    %5 = vector.load %arg4[%c0_4, %c0_5] : memref<128x128xf32, #tpu.memory_space<vmem>>, vector<128x128xf32>
    %cst = arith.constant dense<0.000000e+00> : vector<128x128xf32>
    %6 = tpu.matmul %4, %5, %cst {dimension_numbers = #tpu.dot_dimension_numbers<[1], [1], [0], [0], [0, 0, 1, 0], [], []>} : vector<128x128xf32>, vector<128x128xf32>, vector<128x128xf32> -> vector<128x128xf32>
    %7 = arith.addf %3, %6 : vector<128x128xf32>
    %c0_6 = arith.constant 0 : index
    %c0_7 = arith.constant 0 : index
    %8 = vector.load %arg8[%c0_6, %c0_7] : memref<128x128xf32, #tpu.memory_space<vmem>>, vector<128x128xf32>
    tpu.vector_store %arg8[%c0_6, %c0_7], %7 {strides = array<i32>} : memref<128x128xf32, #tpu.memory_space<vmem>>, vector<128x128xf32>,
    %c1_i32 = arith.constant 1 : i32
    %9 = arith.cmpi eq, %arg2, %c1_i32 : i32
    %10 = arith.extui %9 : i1 to i32
    %c0_i32_8 = arith.constant 0 : i32
    %11 = arith.cmpi ne, %10, %c0_i32_8 : i32
    scf.if %11 {
      %c0_9 = arith.constant 0 : index
      %c0_10 = arith.constant 0 : index
      %12 = vector.load %arg8[%c0_9, %c0_10] : memref<128x128xf32, #tpu.memory_space<vmem>>, vector<128x128xf32>
      %c0_11 = arith.constant 0 : index
      %c0_12 = arith.constant 0 : index
      %13 = vector.load %arg5[%c0_11, %c0_12] : memref<128x128xf32, #tpu.memory_space<vmem>>, vector<128x128xf32>
      %c0_13 = arith.constant 0 : index
      %c0_14 = arith.constant 0 : index
      %14 = vector.load %arg6[%c0_13, %c0_14] : memref<128x128xf32, #tpu.memory_space<vmem>>, vector<128x128xf32>
      %c64_i32 = arith.constant 64 : i32
      %15 = tpu.dynamic_rotate %12 by %c64_i32 dim 1 : vector<128x128xf32>, i32 -> vector<128x128xf32>
      %16 = tpu.iota {dimensions = array<i32: 1>} : vector<128x128xi32>
      %c64_i32_15 = arith.constant 64 : i32
      %17 = vector.broadcast %c64_i32_15 : i32 to vector<128x128xi32>
      %18 = arith.cmpi slt, %16, %17 : vector<128x128xi32>
      %cst_16 = arith.constant 0.000000e+00 : f32
      %19 = vector.broadcast %cst_16 : f32 to vector<128x128xf32>
      %20 = arith.subf %19, %15 : vector<128x128xf32>
      %21 = arith.select %18, %20, %15 : vector<128x128xi1>, vector<128x128xf32>
      %22 = arith.mulf %12, %13 : vector<128x128xf32>
      %23 = arith.mulf %21, %14 : vector<128x128xf32>
      %24 = arith.addf %22, %23 : vector<128x128xf32>
      %c0_17 = arith.constant 0 : index
      %c0_18 = arith.constant 0 : index
      %25 = vector.load %arg7[%c0_17, %c0_18] : memref<128x128xf32, #tpu.memory_space<vmem>>, vector<128x128xf32>
      tpu.vector_store %arg7[%c0_17, %c0_18], %24 {strides = array<i32>} : memref<128x128xf32, #tpu.memory_space<vmem>>, vector<128x128xf32>,
    } else {
    }
    return
  }
  func.func @transform_0(%arg0: i32, %arg1: i32, %arg2: i32) -> (i32, i32) {
    %c0_i32 = arith.constant 0 : i32
    return %arg0, %arg2 : i32, i32
  }
  func.func @transform_1(%arg0: i32, %arg1: i32, %arg2: i32) -> (i32, i32) {
    %c0_i32 = arith.constant 0 : i32
    return %arg1, %arg2 : i32, i32
  }
  func.func @transform_2(%arg0: i32, %arg1: i32, %arg2: i32) -> (i32, i32) {
    %c0_i32 = arith.constant 0 : i32
    %c0_i32_0 = arith.constant 0 : i32
    return %arg0, %c0_i32 : i32, i32
  }
  func.func @transform_3(%arg0: i32, %arg1: i32, %arg2: i32) -> (i32, i32) {
    %c0_i32 = arith.constant 0 : i32
    %c0_i32_0 = arith.constant 0 : i32
    return %arg0, %c0_i32 : i32, i32
  }
  func.func @transform_4(%arg0: i32, %arg1: i32, %arg2: i32) -> (i32, i32) {
    %c0_i32 = arith.constant 0 : i32
    return %arg0, %arg1 : i32, i32
  }
}

</mosaic_0001>

<llo_original>
// kernel: tpu_custom_call.1
$region0: #{tpu_custom_call.1}
  #allocation0 [shape = 'u32[]', space=smem, size = 0x4, offset = 0x4, fixed_abs, tag = 'smem constant byte address 0x4 - core index']
  #allocation1 [shape = 'u32[144,128]{1,0:T(1,128)}', space=vmem, size = 0x12000, scoped, tag = 'internal scratch']
  #allocation2 [shape = 'f32[128,128]{1,0:T(8,128)}', space=vmem, size = 0x10000, scoped, tag = 'scratch operand']
  %s0 = inlined_call_operand.hbm [shape: f32[512,256], index: 0, kind: input, shape index: {}]
  %s1 = inlined_call_operand.hbm [shape: f32[256,256], index: 1, kind: input, shape index: {}]
  %s2 = inlined_call_operand.hbm [shape: f32[512,128], index: 2, kind: input, shape index: {}]
  %s3 = inlined_call_operand.hbm [shape: f32[512,128], index: 3, kind: input, shape index: {}]
  %s4 = inlined_call_operand.hbm [shape: f32[512,256], index: 4, kind: output, shape index: {}]
  %s5 = sld [smem:[#allocation0]]
  $region73: #{tpu_custom_call.1} parent=0
    _
  %s7 = ssub.s32 1, %s5
  %s8 = scalar_select 0, %s7, %s5
  $region1: #{tpu_custom_call.1} parent=0
    #allocation3 [shape = 'u8[131072]{0}', space=vmem, size = 0x20000, scoped, tag = 'input window, operand 0']
    #allocation4 [shape = 's32[2]{0}', space=sflag, size = 0x8, scoped, tag = 'scoped memory for tpu_custom_call.1']
    #allocation5 [shape = 's32[2]{0}', space=sflag, size = 0x8, scoped, tag = 'scoped memory for tpu_custom_call.1']
    #allocation6 [shape = 'u8[131072]{0}', space=vmem, size = 0x20000, scoped, tag = 'input window, operand 1']
    #allocation7 [shape = 's32[2]{0}', space=sflag, size = 0x8, scoped, tag = 'scoped memory for tpu_custom_call.1']
    #allocation8 [shape = 'u8[131072]{0}', space=vmem, size = 0x20000, scoped, tag = 'input window, operand 2']
    #allocation9 [shape = 'u8[131072]{0}', space=vmem, size = 0x20000, scoped, tag = 'input window, operand 3']
    #allocation10 [shape = 's32[2]{0}', space=sflag, size = 0x8, scoped, tag = 'scoped memory for tpu_custom_call.1']
    #allocation11 [shape = 'u8[131072]{0}', space=vmem, size = 0x20000, scoped, tag = 'output window, operand 0']
    %9 = vsyncpa [#allocation4], 0
    %s10 = scalar_lea.sflag [#allocation4], 1
    %11 = vsyncpa %s10, 0
    %12 = vsyncpa [#allocation7], 0
    %s13 = scalar_lea.sflag [#allocation7], 1
    %14 = vsyncpa %s13, 0
    %15 = vsyncpa [#allocation10], 0
    %s16 = scalar_lea.sflag [#allocation10], 1
    %17 = vsyncpa %s16, 0
    %18 = vsyncpa [#allocation5], 0
    %s19 = scalar_lea.sflag [#allocation5], 1
    %20 = vsyncpa %s19, 0
    loop: start=0, step=1, limit=18
    $region2: #{tpu_custom_call.1} parent=1 // loop_pre_header
      _
    $region3: #{tpu_custom_call.1} parent=1 // loop_header
      %s22 = sphi 0, %s26
      %p23 = scmp.ge.s32.totalorder %s22, 18
      %s29 = sphi 0, %s48
      %s30 = sphi 0, %s44
      %s31 = sphi 0, %s40
      %s32 = sphi 0, %s29
      %s33 = sphi 0, %s30
      %s34 = sphi 0, %s31
      %s35 = sphi 0, %s32
      %s36 = sphi 0, %s33
      %s37 = sphi 0, %s34
      %s53 = sphi 0, %s55
      %s56 = sphi 0, %s53
      %s57 = sphi 0, %s56
      %s73 = sphi 0, %s57
      %s81 = sphi 0, %s83
      %s84 = sphi 0, %s81
      %s85 = sphi 0, %s84
      %s101 = sphi 0, %s85
      %s107 = sphi 0, %s109
      %s110 = sphi 0, %s107
      %s111 = sphi 0, %s110
      %s127 = sphi 0, %s111
      %s133 = sphi 0, %s135
      %s136 = sphi 0, %s133
      %s137 = sphi 0, %s136
      %s153 = sphi 0, %s137
      %s161 = sphi 0, %s163
      %s164 = sphi 0, %s161
      %s165 = sphi 0, %s164
      %s181 = sphi 0, %s165
    $region4: #{tpu_custom_call.1} parent=1 // loop_header_branch
      %25 = sbr.rel (%p23) target = $region8
    $region5: #{tpu_custom_call.1} parent=1 // loop_body
      %s27 = ssub.s32 %s22, 1
      %s28 = ssub.s32 %s22, 2
      %s38 = sadd.s32 1, %s31
      %p39 = scmp.ge.s32.totalorder %s38, 2
      %s40 = scalar_select %p39, 0, %s38
      %s41 = sadd.s32 1, %s30
      %s42 = scalar_select %p39, %s41, %s30
      %p43 = scmp.ge.s32.totalorder %s42, 2
      %s44 = scalar_select %p43, 0, %s42
      %s45 = sadd.s32 1, %s29
      %s46 = scalar_select %p43, %s45, %s29
      %p47 = scmp.ge.s32.totalorder %s46, 4
      %s48 = scalar_select %p47, 0, %s46
      %s49 = ssub.s32 %s29, %s48
      %s50 = ssub.s32 %s31, %s40
      %s51 = sor.u32 %s49, %s50
      %p52 = scmp.eq.s32.totalorder %s51, 0
      %s54 = sadd.s32 %s53, 1
      %s55 = scalar_select %p52, %s53, %s54
      %p58 = pneg %p52
      %p59 = scmp.eq.s32.totalorder %s22, 15
      %p60 = por %p58, %p59
      %p61 = scmp.ne.s32.totalorder %s53, %s56
      %p62 = scmp.eq.s32.totalorder %s22, 0
      %p63 = por %p61, %p62
      %p64 = scmp.ne.s32.totalorder %s53, %s56
      %p65 = scmp.eq.s32.totalorder %s27, 15
      %p66 = por %p64, %p65
      %p67 = scmp.ne.s32.totalorder %s56, %s57
      %p68 = scmp.eq.s32.totalorder %s27, 0
      %p69 = por %p67, %p68
      %p70 = scmp.ne.s32.totalorder %s56, %s57
      %p71 = scmp.eq.s32.totalorder %s28, 15
      %p72 = por %p70, %p71
      %p74 = scmp.ne.s32.totalorder %s57, %s73
      %p75 = scmp.eq.s32.totalorder %s28, 0
      %p76 = por %p74, %p75
      %s77 = ssub.s32 %s30, %s44
      %s78 = ssub.s32 %s31, %s40
      %s79 = sor.u32 %s77, %s78
      %p80 = scmp.eq.s32.totalorder %s79, 0
      %s82 = sadd.s32 %s81, 1
      %s83 = scalar_select %p80, %s81, %s82
      %p86 = pneg %p80
      %p87 = scmp.eq.s32.totalorder %s22, 15
      %p88 = por %p86, %p87
      %p89 = scmp.ne.s32.totalorder %s81, %s84
      %p90 = scmp.eq.s32.totalorder %s22, 0
      %p91 = por %p89, %p90
      %p92 = scmp.ne.s32.totalorder %s81, %s84
      %p93 = scmp.eq.s32.totalorder %s27, 15
      %p94 = por %p92, %p93
      %p95 = scmp.ne.s32.totalorder %s84, %s85
      %p96 = scmp.eq.s32.totalorder %s27, 0
      %p97 = por %p95, %p96
      %p98 = scmp.ne.s32.totalorder %s84, %s85
      %p99 = scmp.eq.s32.totalorder %s28, 15
      %p100 = por %p98, %p99
      %p102 = scmp.ne.s32.totalorder %s85, %s101
      %p103 = scmp.eq.s32.totalorder %s28, 0
      %p104 = por %p102, %p103
      %s105 = ssub.s32 %s29, %s48
      %p106 = scmp.eq.s32.totalorder %s105, 0
      %s108 = sadd.s32 %s107, 1
      %s109 = scalar_select %p106, %s107, %s108
      %p112 = pneg %p106
      %p113 = scmp.eq.s32.totalorder %s22, 15
      %p114 = por %p112, %p113
      %p115 = scmp.ne.s32.totalorder %s107, %s110
      %p116 = scmp.eq.s32.totalorder %s22, 0
      %p117 = por %p115, %p116
      %p118 = scmp.ne.s32.totalorder %s107, %s110
      %p119 = scmp.eq.s32.totalorder %s27, 15
      %p120 = por %p118, %p119
      %p121 = scmp.ne.s32.totalorder %s110, %s111
      %p122 = scmp.eq.s32.totalorder %s27, 0
      %p123 = por %p121, %p122
      %p124 = scmp.ne.s32.totalorder %s110, %s111
      %p125 = scmp.eq.s32.totalorder %s28, 15
      %p126 = por %p124, %p125
      %p128 = scmp.ne.s32.totalorder %s111, %s127
      %p129 = scmp.eq.s32.totalorder %s28, 0
      %p130 = por %p128, %p129
      %s131 = ssub.s32 %s29, %s48
      %p132 = scmp.eq.s32.totalorder %s131, 0
      %s134 = sadd.s32 %s133, 1
      %s135 = scalar_select %p132, %s133, %s134
      %p138 = pneg %p132
      %p139 = scmp.eq.s32.totalorder %s22, 15
      %p140 = por %p138, %p139
      %p141 = scmp.ne.s32.totalorder %s133, %s136
      %p142 = scmp.eq.s32.totalorder %s22, 0
      %p143 = por %p141, %p142
      %p144 = scmp.ne.s32.totalorder %s133, %s136
      %p145 = scmp.eq.s32.totalorder %s27, 15
      %p146 = por %p144, %p145
      %p147 = scmp.ne.s32.totalorder %s136, %s137
      %p148 = scmp.eq.s32.totalorder %s27, 0
      %p149 = por %p147, %p148
      %p150 = scmp.ne.s32.totalorder %s136, %s137
      %p151 = scmp.eq.s32.totalorder %s28, 15
      %p152 = por %p150, %p151
      %p154 = scmp.ne.s32.totalorder %s137, %s153
      %p155 = scmp.eq.s32.totalorder %s28, 0
      %p156 = por %p154, %p155
      %s157 = ssub.s32 %s29, %s48
      %s158 = ssub.s32 %s30, %s44
      %s159 = sor.u32 %s157, %s158
      %p160 = scmp.eq.s32.totalorder %s159, 0
      %s162 = sadd.s32 %s161, 1
      %s163 = scalar_select %p160, %s161, %s162
      %p166 = pneg %p160
      %p167 = scmp.eq.s32.totalorder %s22, 15
      %p168 = por %p166, %p167
      %p169 = scmp.ne.s32.totalorder %s161, %s164
      %p170 = scmp.eq.s32.totalorder %s22, 0
      %p171 = por %p169, %p170
      %p172 = scmp.ne.s32.totalorder %s161, %s164
      %p173 = scmp.eq.s32.totalorder %s27, 15
      %p174 = por %p172, %p173
      %p175 = scmp.ne.s32.totalorder %s164, %s165
      %p176 = scmp.eq.s32.totalorder %s27, 0
      %p177 = por %p175, %p176
      %p178 = scmp.ne.s32.totalorder %s164, %s165
      %p179 = scmp.eq.s32.totalorder %s28, 15
      %p180 = por %p178, %p179
      %p182 = scmp.ne.s32.totalorder %s165, %s181
      %p183 = scmp.eq.s32.totalorder %s28, 0
      %p184 = por %p182, %p183
      %p185 = scmp.le.s32.totalorder 1, %s22
      %p186 = scmp.lt.s32.totalorder %s22, 17
      %p187 = pnand %p185, %p186
      %p188 = pneg %p187
      // Predicated region
      $region9: #{tpu_custom_call.1} parent=5 // pred_check
        _
      $region10: #{tpu_custom_call.1} parent=5 // pred_check_branch
        %190 = sbr.rel (%p187) target = $region12
      $region11: #{tpu_custom_call.1} parent=5 // pred_region
        %s191 = ssub.s32 %s22, 1
      $region12: #{tpu_custom_call.1} parent=5 // pred_fallthru
        _
      %p192 = scmp.lt.s32.totalorder %s22, 16
      // Predicated region
      $region13: #{tpu_custom_call.1} parent=5 // pred_check
        %p193 = pneg %p192
      $region14: #{tpu_custom_call.1} parent=5 // pred_check_branch
        %195 = sbr.rel (%p193) target = $region16
      $region15: #{tpu_custom_call.1} parent=5 // pred_region
        // Predicated region
        $region17: #{tpu_custom_call.1} parent=15 // pred_check
          %p196 = pneg %p63
        $region18: #{tpu_custom_call.1} parent=15 // pred_check_branch
          %198 = sbr.rel (%p196) target = $region20
        $region19: #{tpu_custom_call.1} parent=15 // pred_region
          %s199 = sand.u32 %s53, 1
          %s200 = scalar_lea.sflag [#allocation4], %s199
          %s201 = sand.u32 %s53, 1
          %s202 = smul.addr %s201, 128
          %s203 = scalar_lea.vmem [#allocation3], %s202
          %s204 = smul.u32 16, %s29
          %s206 = ssub.s32 2048, 2048
          %207 = vsyncadd %s200, %s206
          %s208 = smul.addr %s204, 2
          %s209 = sadd.s32 %s31, %s208
          %s210 = smul.addr %s209, 128
          %s211 = scalar_lea.hbm %s0, %s210
          %s212 = sshll.u32 %s203, 4
          %s213 = int_to_ptr.vmem [resolvable:$true] %s212
          %218 = dma.hbm_to_vmem [thread:$0]  %s211, 2048, %s213, %s200, 256, 128, 8
        $region20: #{tpu_custom_call.1} parent=15 // pred_fallthru
          _
        // Predicated region
        $region21: #{tpu_custom_call.1} parent=15 // pred_check
          %p219 = pneg %p91
        $region22: #{tpu_custom_call.1} parent=15 // pred_check_branch
          %221 = sbr.rel (%p219) target = $region24
        $region23: #{tpu_custom_call.1} parent=15 // pred_region
          %s222 = sand.u32 %s22, 1
          %s223 = scalar_lea.sflag [#allocation7], %s222
          %s224 = sand.u32 %s81, 1
          %s225 = smul.addr %s224, 128
          %s226 = scalar_lea.vmem [#allocation6], %s225
          %s227 = smul.u32 16, %s30
          %s229 = ssub.s32 2048, 2048
          %230 = vsyncadd %s223, %s229
          %s231 = smul.addr %s227, 2
          %s232 = sadd.s32 %s31, %s231
          %s233 = smul.addr %s232, 128
          %s234 = scalar_lea.hbm %s1, %s233
          %s235 = sshll.u32 %s226, 4
          %s236 = int_to_ptr.vmem [resolvable:$true] %s235
          %241 = dma.hbm_to_vmem [thread:$0]  %s234, 2048, %s236, %s223, 256, 128, 8
        $region24: #{tpu_custom_call.1} parent=15 // pred_fallthru
          _
        // Predicated region
        $region25: #{tpu_custom_call.1} parent=15 // pred_check
          %p242 = pneg %p117
        $region26: #{tpu_custom_call.1} parent=15 // pred_check_branch
          %244 = sbr.rel (%p242) target = $region28
        $region27: #{tpu_custom_call.1} parent=15 // pred_region
          %s245 = sand.u32 %s22, 1
          %s246 = scalar_lea.sflag [#allocation7], %s245
          %s247 = sand.u32 %s107, 1
          %s248 = smul.addr %s247, 128
          %s249 = scalar_lea.vmem [#allocation8], %s248
          %s250 = smul.u32 16, %s29
          %s252 = ssub.s32 2048, 2048
          %253 = vsyncadd %s246, %s252
          %s254 = smul.addr %s250, 128
          %s255 = scalar_lea.hbm %s2, %s254
          %s256 = sshll.u32 %s249, 4
          %s257 = int_to_ptr.vmem [resolvable:$true] %s256
          %262 = dma.hbm_to_vmem [thread:$0]  %s255, 2048, %s257, %s246, 128, 128, 8
        $region28: #{tpu_custom_call.1} parent=15 // pred_fallthru
          _
        // Predicated region
        $region29: #{tpu_custom_call.1} parent=15 // pred_check
          %p263 = pneg %p143
        $region30: #{tpu_custom_call.1} parent=15 // pred_check_branch
          %265 = sbr.rel (%p263) target = $region32
        $region31: #{tpu_custom_call.1} parent=15 // pred_region
          %s266 = sand.u32 %s133, 1
          %s267 = scalar_lea.sflag [#allocation10], %s266
          %s268 = sand.u32 %s133, 1
          %s269 = smul.addr %s268, 128
          %s270 = scalar_lea.vmem [#allocation9], %s269
          %s271 = smul.u32 16, %s29
          %s273 = ssub.s32 2048, 2048
          %274 = vsyncadd %s267, %s273
          %s275 = smul.addr %s271, 128
          %s276 = scalar_lea.hbm %s3, %s275
          %s277 = sshll.u32 %s270, 4
          %s278 = int_to_ptr.vmem [resolvable:$true] %s277
          %283 = dma.hbm_to_vmem [thread:$0]  %s276, 2048, %s278, %s267, 128, 128, 8
        $region32: #{tpu_custom_call.1} parent=15 // pred_fallthru
          _
      $region16: #{tpu_custom_call.1} parent=5 // pred_fallthru
        _
      %p284 = scmp.le.s32.totalorder 1, %s22
      %p285 = scmp.lt.s32.totalorder %s22, 17
      %p286 = pnand %p284, %p285
      %p287 = pneg %p286
      // Predicated region
      $region33: #{tpu_custom_call.1} parent=5 // pred_check
        _
      $region34: #{tpu_custom_call.1} parent=5 // pred_check_branch
        %289 = sbr.rel (%p286) target = $region36
      $region35: #{tpu_custom_call.1} parent=5 // pred_region
        %s290 = ssub.s32 %s22, 1
        %s291 = sand.u32 %s56, 1
        %s292 = scalar_lea.sflag [#allocation4], %s291
        %s293 = sand.u32 %s56, 1
        %s294 = smul.addr %s293, 128
        %s295 = scalar_lea.vmem [#allocation3], %s294
        // Predicated region
        $region37: #{tpu_custom_call.1} parent=35 // pred_check
          %p296 = pneg %p69
        $region38: #{tpu_custom_call.1} parent=35 // pred_check_branch
          %298 = sbr.rel (%p296) target = $region40
        $region39: #{tpu_custom_call.1} parent=35 // pred_region
          %299 = dma.done %s292, 2048
        $region40: #{tpu_custom_call.1} parent=35 // pred_fallthru
          _
        %s300 = sand.u32 %s27, 1
        %s301 = scalar_lea.sflag [#allocation7], %s300
        %s302 = sand.u32 %s84, 1
        %s303 = smul.addr %s302, 128
        %s304 = scalar_lea.vmem [#allocation6], %s303
        // Predicated region
        $region41: #{tpu_custom_call.1} parent=35 // pred_check
          %p305 = pneg %p97
        $region42: #{tpu_custom_call.1} parent=35 // pred_check_branch
          %307 = sbr.rel (%p305) target = $region44
        $region43: #{tpu_custom_call.1} parent=35 // pred_region
          %308 = dma.done %s301, 2048
        $region44: #{tpu_custom_call.1} parent=35 // pred_fallthru
          _
        %s309 = sand.u32 %s27, 1
        %s310 = scalar_lea.sflag [#allocation7], %s309
        %s311 = sand.u32 %s110, 1
        %s312 = smul.addr %s311, 128
        %s313 = scalar_lea.vmem [#allocation8], %s312
        // Predicated region
        $region45: #{tpu_custom_call.1} parent=35 // pred_check
          %p314 = pneg %p123
        $region46: #{tpu_custom_call.1} parent=35 // pred_check_branch
          %316 = sbr.rel (%p314) target = $region48
        $region47: #{tpu_custom_call.1} parent=35 // pred_region
          %317 = dma.done %s310, 2048
        $region48: #{tpu_custom_call.1} parent=35 // pred_fallthru
          _
        %s318 = sand.u32 %s136, 1
        %s319 = scalar_lea.sflag [#allocation10], %s318
        %s320 = sand.u32 %s136, 1
        %s321 = smul.addr %s320, 128
        %s322 = scalar_lea.vmem [#allocation9], %s321
        // Predicated region
        $region49: #{tpu_custom_call.1} parent=35 // pred_check
          %p323 = pneg %p149
        $region50: #{tpu_custom_call.1} parent=35 // pred_check_branch
          %325 = sbr.rel (%p323) target = $region52
        $region51: #{tpu_custom_call.1} parent=35 // pred_region
          %326 = dma.done %s319, 2048
        $region52: #{tpu_custom_call.1} parent=35 // pred_fallthru
          _
        %s327 = sand.u32 %s56, 1
        %s328 = scalar_lea.sflag [#allocation4], %s327
        %s329 = sand.u32 %s56, 1
        %s330 = smul.addr %s329, 128
        %s331 = scalar_lea.vmem [#allocation3], %s330
        %p332 = pneg %p69
        %p333 = pneg %p66
        %s334 = sand.u32 %s27, 1
        %s335 = scalar_lea.sflag [#allocation7], %s334
        %s336 = sand.u32 %s84, 1
        %s337 = smul.addr %s336, 128
        %s338 = scalar_lea.vmem [#allocation6], %s337
        %p339 = pneg %p97
        %p340 = pneg %p94
        %s341 = sand.u32 %s27, 1
        %s342 = scalar_lea.sflag [#allocation7], %s341
        %s343 = sand.u32 %s110, 1
        %s344 = smul.addr %s343, 128
        %s345 = scalar_lea.vmem [#allocation8], %s344
        %p346 = pneg %p123
        %p347 = pneg %p120
        %s348 = sand.u32 %s136, 1
        %s349 = scalar_lea.sflag [#allocation10], %s348
        %s350 = sand.u32 %s136, 1
        %s351 = smul.addr %s350, 128
        %s352 = scalar_lea.vmem [#allocation9], %s351
        %p353 = pneg %p149
        %p354 = pneg %p146
        %p355 = pneg %p177
        %p356 = pneg %p174
        %s357 = sand.u32 %s164, 1
        %s358 = scalar_lea.sflag [#allocation5], %s357
        %s359 = sand.u32 %s164, 1
        %s360 = smul.addr %s359, 128
        %s361 = scalar_lea.vmem [#allocation11], %s360
        %s362 = smul.u32 16, %s32
        %s363 = smul.u32 16, %s33
        %s364 = smul.u32 16, %s32
        %s365 = smul.u32 16, %s32
        %s366 = smul.u32 16, %s32
        %p367 = scmp.eq.s32.totalorder %s34, 0
        // Predicated region
        $region53: #{tpu_custom_call.1} parent=35 // pred_check
          %p368 = pneg %p367
        $region54: #{tpu_custom_call.1} parent=35 // pred_check_branch
          %370 = sbr.rel (%p368) target = $region56
        $region55: #{tpu_custom_call.1} parent=35 // pred_region
          %371 = vst [vmem:[#allocation2] sm:$0xff] 0.0
          %372 = vst [vmem:[#allocation2 + $0x8] sm:$0xff] 0.0
          %373 = vst [vmem:[#allocation2 + $0x10] sm:$0xff] 0.0
          %374 = vst [vmem:[#allocation2 + $0x18] sm:$0xff] 0.0
          %375 = vst [vmem:[#allocation2 + $0x20] sm:$0xff] 0.0
          %376 = vst [vmem:[#allocation2 + $0x28] sm:$0xff] 0.0
          %377 = vst [vmem:[#allocation2 + $0x30] sm:$0xff] 0.0
          %378 = vst [vmem:[#allocation2 + $0x38] sm:$0xff] 0.0
          %379 = vst [vmem:[#allocation2 + $0x40] sm:$0xff] 0.0
          %380 = vst [vmem:[#allocation2 + $0x48] sm:$0xff] 0.0
          %381 = vst [vmem:[#allocation2 + $0x50] sm:$0xff] 0.0
          %382 = vst [vmem:[#allocation2 + $0x58] sm:$0xff] 0.0
          %383 = vst [vmem:[#allocation2 + $0x60] sm:$0xff] 0.0
          %384 = vst [vmem:[#allocation2 + $0x68] sm:$0xff] 0.0
          %385 = vst [vmem:[#allocation2 + $0x70] sm:$0xff] 0.0
          %386 = vst [vmem:[#allocation2 + $0x78] sm:$0xff] 0.0
        $region56: #{tpu_custom_call.1} parent=35 // pred_fallthru
          _
        %v387 = vld [vmem:[#allocation2] sm:$0xff]
        %v388 = vld [vmem:[#allocation2 + $0x8] sm:$0xff]
        %v389 = vld [vmem:[#allocation2 + $0x10] sm:$0xff]
        %v390 = vld [vmem:[#allocation2 + $0x18] sm:$0xff]
        %v391 = vld [vmem:[#allocation2 + $0x20] sm:$0xff]
        %v392 = vld [vmem:[#allocation2 + $0x28] sm:$0xff]
        %v393 = vld [vmem:[#allocation2 + $0x30] sm:$0xff]
        %v394 = vld [vmem:[#allocation2 + $0x38] sm:$0xff]
        %v395 = vld [vmem:[#allocation2 + $0x40] sm:$0xff]
        %v396 = vld [vmem:[#allocation2 + $0x48] sm:$0xff]
        %v397 = vld [vmem:[#allocation2 + $0x50] sm:$0xff]
        %v398 = vld [vmem:[#allocation2 + $0x58] sm:$0xff]
        %v399 = vld [vmem:[#allocation2 + $0x60] sm:$0xff]
        %v400 = vld [vmem:[#allocation2 + $0x68] sm:$0xff]
        %v401 = vld [vmem:[#allocation2 + $0x70] sm:$0xff]
        %v402 = vld [vmem:[#allocation2 + $0x78] sm:$0xff]
        %v403 = vld [vmem:[%s295] sm:$0xff]
        %v404 = vld [vmem:[%s295 + $0x8] sm:$0xff]
        %v405 = vld [vmem:[%s295 + $0x10] sm:$0xff]
        %v406 = vld [vmem:[%s295 + $0x18] sm:$0xff]
        %v407 = vld [vmem:[%s295 + $0x20] sm:$0xff]
        %v408 = vld [vmem:[%s295 + $0x28] sm:$0xff]
        %v409 = vld [vmem:[%s295 + $0x30] sm:$0xff]
        %v410 = vld [vmem:[%s295 + $0x38] sm:$0xff]
        %v411 = vld [vmem:[%s295 + $0x40] sm:$0xff]
        %v412 = vld [vmem:[%s295 + $0x48] sm:$0xff]
        %v413 = vld [vmem:[%s295 + $0x50] sm:$0xff]
        %v414 = vld [vmem:[%s295 + $0x58] sm:$0xff]
        %v415 = vld [vmem:[%s295 + $0x60] sm:$0xff]
        %v416 = vld [vmem:[%s295 + $0x68] sm:$0xff]
        %v417 = vld [vmem:[%s295 + $0x70] sm:$0xff]
        %v418 = vld [vmem:[%s295 + $0x78] sm:$0xff]
        %v419 = vld [vmem:[%s304] sm:$0xff]
        %v420 = vld [vmem:[%s304 + $0x8] sm:$0xff]
        %v421 = vld [vmem:[%s304 + $0x10] sm:$0xff]
        %v422 = vld [vmem:[%s304 + $0x18] sm:$0xff]
        %v423 = vld [vmem:[%s304 + $0x20] sm:$0xff]
        %v424 = vld [vmem:[%s304 + $0x28] sm:$0xff]
        %v425 = vld [vmem:[%s304 + $0x30] sm:$0xff]
        %v426 = vld [vmem:[%s304 + $0x38] sm:$0xff]
        %v427 = vld [vmem:[%s304 + $0x40] sm:$0xff]
        %v428 = vld [vmem:[%s304 + $0x48] sm:$0xff]
        %v429 = vld [vmem:[%s304 + $0x50] sm:$0xff]
        %v430 = vld [vmem:[%s304 + $0x58] sm:$0xff]
        %v431 = vld [vmem:[%s304 + $0x60] sm:$0xff]
        %v432 = vld [vmem:[%s304 + $0x68] sm:$0xff]
        %v433 = vld [vmem:[%s304 + $0x70] sm:$0xff]
        %v434 = vld [vmem:[%s304 + $0x78] sm:$0xff]
        %435 = vmatprep.subr.mxu0 0.0
        %436 = vmatpush1.xpose.msra.mxu0 %v434
        %437 = vmatprep.subr.mxu0 0.0
        %438 = vmatpush1.xpose.msra.mxu0 %v433
        %439 = vmatprep.subr.mxu0 0.0
        %440 = vmatpush1.xpose.msra.mxu0 %v432
        %441 = vmatprep.subr.mxu0 0.0
        %442 = vmatpush1.xpose.msra.mxu0 %v431
        %443 = vmatprep.subr.mxu0 0.0
        %444 = vmatpush1.xpose.msra.mxu0 %v430
        %445 = vmatprep.subr.mxu0 0.0
        %446 = vmatpush1.xpose.msra.mxu0 %v429
        %447 = vmatprep.subr.mxu0 0.0
        %448 = vmatpush1.xpose.msra.mxu0 %v428
        %449 = vmatprep.subr.mxu0 0.0
        %450 = vmatpush1.xpose.msra.mxu0 %v427
        %451 = vmatprep.subr.mxu0 0.0
        %452 = vmatpush1.xpose.msra.mxu0 %v426
        %453 = vmatprep.subr.mxu0 0.0
        %454 = vmatpush1.xpose.msra.mxu0 %v425
        %455 = vmatprep.subr.mxu0 0.0
        %456 = vmatpush1.xpose.msra.mxu0 %v424
        %457 = vmatprep.subr.mxu0 0.0
        %458 = vmatpush1.xpose.msra.mxu0 %v423
        %459 = vmatprep.subr.mxu0 0.0
        %460 = vmatpush1.xpose.msra.mxu0 %v422
        %461 = vmatprep.subr.mxu0 0.0
        %462 = vmatpush1.xpose.msra.mxu0 %v421
        %463 = vmatprep.subr.mxu0 0.0
        %464 = vmatpush1.xpose.msra.mxu0 %v420
        %465 = vmatprep.subr.mxu0 0.0
        %466 = vmatpush1.xpose.msra.mxu0 %v419
        %467 = vmatprep.subr.mxu0 0.0
        %468 = vmatpush2.xpose.msra.mxu0 0.0
        %469 = vmatprep.subr.mxu0 0.0
        %470 = vmatpush2.xpose.msra.mxu0 0.0
        %471 = vmatprep.subr.mxu0 0.0
        %472 = vmatpush2.xpose.msra.mxu0 0.0
        %473 = vmatprep.subr.mxu0 0.0
        %474 = vmatpush2.xpose.msra.mxu0 0.0
        %475 = vmatprep.subr.mxu0 0.0
        %476 = vmatpush2.xpose.msra.mxu0 0.0
        %477 = vmatprep.subr.mxu0 0.0
        %478 = vmatpush2.xpose.msra.mxu0 0.0
        %479 = vmatprep.subr.mxu0 0.0
        %480 = vmatpush2.xpose.msra.mxu0 0.0
        %481 = vmatprep.subr.mxu0 0.0
        %482 = vmatpush2.xpose.msra.mxu0 0.0
        %483 = vmatprep.subr.mxu0 0.0
        %484 = vmatpush2.xpose.msra.mxu0 0.0
        %485 = vmatprep.subr.mxu0 0.0
        %486 = vmatpush2.xpose.msra.mxu0 0.0
        %487 = vmatprep.subr.mxu0 0.0
        %488 = vmatpush2.xpose.msra.mxu0 0.0
        %489 = vmatprep.subr.mxu0 0.0
        %490 = vmatpush2.xpose.msra.mxu0 0.0
        %491 = vmatprep.subr.mxu0 0.0
        %492 = vmatpush2.xpose.msra.mxu0 0.0
        %493 = vmatprep.subr.mxu0 0.0
        %494 = vmatpush2.xpose.msra.mxu0 0.0
        %495 = vmatprep.subr.mxu0 0.0
        %496 = vmatpush2.xpose.msra.mxu0 0.0
        %497 = vmatprep.subr.mxu0 0.0
        %498 = vmatpush2.xpose.msra.mxu0 0.0
        %499 = vmatprep.mubr.f32.mxu0 0.0
        %500 = vmatmul.mubr.f32.gmra.mxu0 %v403
        %v501 = vpop.f32.mrf.mxu0
        %v502 = vadd.f32 0.0, %v501
        %v503 = vpop.f32.mrf.mxu0
        %504 = vmatprep.mubr.f32.mxu0 0.0
        %505 = vmatmul.mubr.f32.gmra.mxu0 %v404
        %v506 = vpop.f32.mrf.mxu0
        %v507 = vadd.f32 0.0, %v506
        %v508 = vpop.f32.mrf.mxu0
        %509 = vmatprep.mubr.f32.mxu0 0.0
        %510 = vmatmul.mubr.f32.gmra.mxu0 %v405
        %v511 = vpop.f32.mrf.mxu0
        %v512 = vadd.f32 0.0, %v511
        %v513 = vpop.f32.mrf.mxu0
        %514 = vmatprep.mubr.f32.mxu0 0.0
        %515 = vmatmul.mubr.f32.gmra.mxu0 %v406
        %v516 = vpop.f32.mrf.mxu0
        %v517 = vadd.f32 0.0, %v516
        %v518 = vpop.f32.mrf.mxu0
        %519 = vmatprep.mubr.f32.mxu0 0.0
        %520 = vmatmul.mubr.f32.gmra.mxu0 %v407
        %v521 = vpop.f32.mrf.mxu0
        %v522 = vadd.f32 0.0, %v521
        %v523 = vpop.f32.mrf.mxu0
        %524 = vmatprep.mubr.f32.mxu0 0.0
        %525 = vmatmul.mubr.f32.gmra.mxu0 %v408
        %v526 = vpop.f32.mrf.mxu0
        %v527 = vadd.f32 0.0, %v526
        %v528 = vpop.f32.mrf.mxu0
        %529 = vmatprep.mubr.f32.mxu0 0.0
        %530 = vmatmul.mubr.f32.gmra.mxu0 %v409
        %v531 = vpop.f32.mrf.mxu0
        %v532 = vadd.f32 0.0, %v531
        %v533 = vpop.f32.mrf.mxu0
        %534 = vmatprep.mubr.f32.mxu0 0.0
        %535 = vmatmul.mubr.f32.gmra.mxu0 %v410
        %v536 = vpop.f32.mrf.mxu0
        %v537 = vadd.f32 0.0, %v536
        %v538 = vpop.f32.mrf.mxu0
        %539 = vmatprep.mubr.f32.mxu0 0.0
        %540 = vmatmul.mubr.f32.gmra.mxu0 %v411
        %v541 = vpop.f32.mrf.mxu0
        %v542 = vadd.f32 0.0, %v541
        %v543 = vpop.f32.mrf.mxu0
        %544 = vmatprep.mubr.f32.mxu0 0.0
        %545 = vmatmul.mubr.f32.gmra.mxu0 %v412
        %v546 = vpop.f32.mrf.mxu0
        %v547 = vadd.f32 0.0, %v546
        %v548 = vpop.f32.mrf.mxu0
        %549 = vmatprep.mubr.f32.mxu0 0.0
        %550 = vmatmul.mubr.f32.gmra.mxu0 %v413
        %v551 = vpop.f32.mrf.mxu0
        %v552 = vadd.f32 0.0, %v551
        %v553 = vpop.f32.mrf.mxu0
        %554 = vmatprep.mubr.f32.mxu0 0.0
        %555 = vmatmul.mubr.f32.gmra.mxu0 %v414
        %v556 = vpop.f32.mrf.mxu0
        %v557 = vadd.f32 0.0, %v556
        %v558 = vpop.f32.mrf.mxu0
        %559 = vmatprep.mubr.f32.mxu0 0.0
        %560 = vmatmul.mubr.f32.gmra.mxu0 %v415
        %v561 = vpop.f32.mrf.mxu0
        %v562 = vadd.f32 0.0, %v561
        %v563 = vpop.f32.mrf.mxu0
        %564 = vmatprep.mubr.f32.mxu0 0.0
        %565 = vmatmul.mubr.f32.gmra.mxu0 %v416
        %v566 = vpop.f32.mrf.mxu0
        %v567 = vadd.f32 0.0, %v566
        %v568 = vpop.f32.mrf.mxu0
        %569 = vmatprep.mubr.f32.mxu0 0.0
        %570 = vmatmul.mubr.f32.gmra.mxu0 %v417
        %v571 = vpop.f32.mrf.mxu0
        %v572 = vadd.f32 0.0, %v571
        %v573 = vpop.f32.mrf.mxu0
        %574 = vmatprep.mubr.f32.mxu0 0.0
        %575 = vmatmul.mubr.f32.gmra.mxu0 %v418
        %v576 = vpop.f32.mrf.mxu0
        %v577 = vadd.f32 0.0, %v576
        %v578 = vpop.f32.mrf.mxu0
        %579 = vdwg.mxu0
        %v580 = vadd.f32 %v387, %v502
        %v581 = vadd.f32 %v388, %v507
        %v582 = vadd.f32 %v389, %v512
        %v583 = vadd.f32 %v390, %v517
        %v584 = vadd.f32 %v391, %v522
        %v585 = vadd.f32 %v392, %v527
        %v586 = vadd.f32 %v393, %v532
        %v587 = vadd.f32 %v394, %v537
        %v588 = vadd.f32 %v395, %v542
        %v589 = vadd.f32 %v396, %v547
        %v590 = vadd.f32 %v397, %v552
        %v591 = vadd.f32 %v398, %v557
        %v592 = vadd.f32 %v399, %v562
        %v593 = vadd.f32 %v400, %v567
        %v594 = vadd.f32 %v401, %v572
        %v595 = vadd.f32 %v402, %v577
        %596 = vst [vmem:[#allocation2] sm:$0xff] %v580
        %597 = vst [vmem:[#allocation2 + $0x8] sm:$0xff] %v581
        %598 = vst [vmem:[#allocation2 + $0x10] sm:$0xff] %v582
        %599 = vst [vmem:[#allocation2 + $0x18] sm:$0xff] %v583
        %600 = vst [vmem:[#allocation2 + $0x20] sm:$0xff] %v584
        %601 = vst [vmem:[#allocation2 + $0x28] sm:$0xff] %v585
        %602 = vst [vmem:[#allocation2 + $0x30] sm:$0xff] %v586
        %603 = vst [vmem:[#allocation2 + $0x38] sm:$0xff] %v587
        %604 = vst [vmem:[#allocation2 + $0x40] sm:$0xff] %v588
        %605 = vst [vmem:[#allocation2 + $0x48] sm:$0xff] %v589
        %606 = vst [vmem:[#allocation2 + $0x50] sm:$0xff] %v590
        %607 = vst [vmem:[#allocation2 + $0x58] sm:$0xff] %v591
        %608 = vst [vmem:[#allocation2 + $0x60] sm:$0xff] %v592
        %609 = vst [vmem:[#allocation2 + $0x68] sm:$0xff] %v593
        %610 = vst [vmem:[#allocation2 + $0x70] sm:$0xff] %v594
        %611 = vst [vmem:[#allocation2 + $0x78] sm:$0xff] %v595
        %p612 = scmp.eq.s32.totalorder %s34, 1
        // Predicated region
        $region57: #{tpu_custom_call.1} parent=35 // pred_check
          %p613 = pneg %p612
        $region58: #{tpu_custom_call.1} parent=35 // pred_check_branch
          %615 = sbr.rel (%p613) target = $region60
        $region59: #{tpu_custom_call.1} parent=35 // pred_region
          %v616 = vld [vmem:[#allocation2] sm:$0xff]
          %v617 = vld [vmem:[#allocation2 + $0x8] sm:$0xff]
          %v618 = vld [vmem:[#allocation2 + $0x10] sm:$0xff]
          %v619 = vld [vmem:[#allocation2 + $0x18] sm:$0xff]
          %v620 = vld [vmem:[#allocation2 + $0x20] sm:$0xff]
          %v621 = vld [vmem:[#allocation2 + $0x28] sm:$0xff]
          %v622 = vld [vmem:[#allocation2 + $0x30] sm:$0xff]
          %v623 = vld [vmem:[#allocation2 + $0x38] sm:$0xff]
          %v624 = vld [vmem:[#allocation2 + $0x40] sm:$0xff]
          %v625 = vld [vmem:[#allocation2 + $0x48] sm:$0xff]
          %v626 = vld [vmem:[#allocation2 + $0x50] sm:$0xff]
          %v627 = vld [vmem:[#allocation2 + $0x58] sm:$0xff]
          %v628 = vld [vmem:[#allocation2 + $0x60] sm:$0xff]
          %v629 = vld [vmem:[#allocation2 + $0x68] sm:$0xff]
          %v630 = vld [vmem:[#allocation2 + $0x70] sm:$0xff]
          %v631 = vld [vmem:[#allocation2 + $0x78] sm:$0xff]
          %v632 = vld [vmem:[%s313] sm:$0xff]
          %v633 = vld [vmem:[%s313 + $0x8] sm:$0xff]
          %v634 = vld [vmem:[%s313 + $0x10] sm:$0xff]
          %v635 = vld [vmem:[%s313 + $0x18] sm:$0xff]
          %v636 = vld [vmem:[%s313 + $0x20] sm:$0xff]
          %v637 = vld [vmem:[%s313 + $0x28] sm:$0xff]
          %v638 = vld [vmem:[%s313 + $0x30] sm:$0xff]
          %v639 = vld [vmem:[%s313 + $0x38] sm:$0xff]
          %v640 = vld [vmem:[%s313 + $0x40] sm:$0xff]
          %v641 = vld [vmem:[%s313 + $0x48] sm:$0xff]
          %v642 = vld [vmem:[%s313 + $0x50] sm:$0xff]
          %v643 = vld [vmem:[%s313 + $0x58] sm:$0xff]
          %v644 = vld [vmem:[%s313 + $0x60] sm:$0xff]
          %v645 = vld [vmem:[%s313 + $0x68] sm:$0xff]
          %v646 = vld [vmem:[%s313 + $0x70] sm:$0xff]
          %v647 = vld [vmem:[%s313 + $0x78] sm:$0xff]
          %v648 = vld [vmem:[%s322] sm:$0xff]
          %v649 = vld [vmem:[%s322 + $0x8] sm:$0xff]
          %v650 = vld [vmem:[%s322 + $0x10] sm:$0xff]
          %v651 = vld [vmem:[%s322 + $0x18] sm:$0xff]
          %v652 = vld [vmem:[%s322 + $0x20] sm:$0xff]
          %v653 = vld [vmem:[%s322 + $0x28] sm:$0xff]
          %v654 = vld [vmem:[%s322 + $0x30] sm:$0xff]
          %v655 = vld [vmem:[%s322 + $0x38] sm:$0xff]
          %v656 = vld [vmem:[%s322 + $0x40] sm:$0xff]
          %v657 = vld [vmem:[%s322 + $0x48] sm:$0xff]
          %v658 = vld [vmem:[%s322 + $0x50] sm:$0xff]
          %v659 = vld [vmem:[%s322 + $0x58] sm:$0xff]
          %v660 = vld [vmem:[%s322 + $0x60] sm:$0xff]
          %v661 = vld [vmem:[%s322 + $0x68] sm:$0xff]
          %v662 = vld [vmem:[%s322 + $0x70] sm:$0xff]
          %v663 = vld [vmem:[%s322 + $0x78] sm:$0xff]
          %664 = vrot.lane.b32.xlu0 %v616, 64
          %v665 = vpop.permute.xlu0 %664
          %666 = vrot.lane.b32.xlu0 %v617, 64
          %v667 = vpop.permute.xlu0 %666
          %668 = vrot.lane.b32.xlu0 %v618, 64
          %v669 = vpop.permute.xlu0 %668
          %670 = vrot.lane.b32.xlu0 %v619, 64
          %v671 = vpop.permute.xlu0 %670
          %672 = vrot.lane.b32.xlu0 %v620, 64
          %v673 = vpop.permute.xlu0 %672
          %674 = vrot.lane.b32.xlu0 %v621, 64
          %v675 = vpop.permute.xlu0 %674
          %676 = vrot.lane.b32.xlu0 %v622, 64
          %v677 = vpop.permute.xlu0 %676
          %678 = vrot.lane.b32.xlu0 %v623, 64
          %v679 = vpop.permute.xlu0 %678
          %680 = vrot.lane.b32.xlu0 %v624, 64
          %v681 = vpop.permute.xlu0 %680
          %682 = vrot.lane.b32.xlu0 %v625, 64
          %v683 = vpop.permute.xlu0 %682
          %684 = vrot.lane.b32.xlu0 %v626, 64
          %v685 = vpop.permute.xlu0 %684
          %686 = vrot.lane.b32.xlu0 %v627, 64
          %v687 = vpop.permute.xlu0 %686
          %688 = vrot.lane.b32.xlu0 %v628, 64
          %v689 = vpop.permute.xlu0 %688
          %690 = vrot.lane.b32.xlu0 %v629, 64
          %v691 = vpop.permute.xlu0 %690
          %692 = vrot.lane.b32.xlu0 %v630, 64
          %v693 = vpop.permute.xlu0 %692
          %694 = vrot.lane.b32.xlu0 %v631, 64
          %v695 = vpop.permute.xlu0 %694
          %v696 = vlaneseq
          %v697 = vand.u32 %v696, 127
          %vm698 = vcmp.lt.s32.totalorder %v697, 64
          %v699 = vsub.f32 0.0, %v665
          %v700 = vsub.f32 0.0, %v667
          %v701 = vsub.f32 0.0, %v669
          %v702 = vsub.f32 0.0, %v671
          %v703 = vsub.f32 0.0, %v673
          %v704 = vsub.f32 0.0, %v675
          %v705 = vsub.f32 0.0, %v677
          %v706 = vsub.f32 0.0, %v679
          %v707 = vsub.f32 0.0, %v681
          %v708 = vsub.f32 0.0, %v683
          %v709 = vsub.f32 0.0, %v685
          %v710 = vsub.f32 0.0, %v687
          %v711 = vsub.f32 0.0, %v689
          %v712 = vsub.f32 0.0, %v691
          %v713 = vsub.f32 0.0, %v693
          %v714 = vsub.f32 0.0, %v695
          %v715 = vsel %vm698, %v699, %v665
          %v716 = vsel %vm698, %v700, %v667
          %v717 = vsel %vm698, %v701, %v669
          %v718 = vsel %vm698, %v702, %v671
          %v719 = vsel %vm698, %v703, %v673
          %v720 = vsel %vm698, %v704, %v675
          %v721 = vsel %vm698, %v705, %v677
          %v722 = vsel %vm698, %v706, %v679
          %v723 = vsel %vm698, %v707, %v681
          %v724 = vsel %vm698, %v708, %v683
          %v725 = vsel %vm698, %v709, %v685
          %v726 = vsel %vm698, %v710, %v687
          %v727 = vsel %vm698, %v711, %v689
          %v728 = vsel %vm698, %v712, %v691
          %v729 = vsel %vm698, %v713, %v693
          %v730 = vsel %vm698, %v714, %v695
          %v731 = vmul.f32 %v616, %v632
          %v732 = vmul.f32 %v617, %v633
          %v733 = vmul.f32 %v618, %v634
          %v734 = vmul.f32 %v619, %v635
          %v735 = vmul.f32 %v620, %v636
          %v736 = vmul.f32 %v621, %v637
          %v737 = vmul.f32 %v622, %v638
          %v738 = vmul.f32 %v623, %v639
          %v739 = vmul.f32 %v624, %v640
          %v740 = vmul.f32 %v625, %v641
          %v741 = vmul.f32 %v626, %v642
          %v742 = vmul.f32 %v627, %v643
          %v743 = vmul.f32 %v628, %v644
          %v744 = vmul.f32 %v629, %v645
          %v745 = vmul.f32 %v630, %v646
          %v746 = vmul.f32 %v631, %v647
          %v747 = vmul.f32 %v715, %v648
          %v748 = vmul.f32 %v716, %v649
          %v749 = vmul.f32 %v717, %v650
          %v750 = vmul.f32 %v718, %v651
          %v751 = vmul.f32 %v719, %v652
          %v752 = vmul.f32 %v720, %v653
          %v753 = vmul.f32 %v721, %v654
          %v754 = vmul.f32 %v722, %v655
          %v755 = vmul.f32 %v723, %v656
          %v756 = vmul.f32 %v724, %v657
          %v757 = vmul.f32 %v725, %v658
          %v758 = vmul.f32 %v726, %v659
          %v759 = vmul.f32 %v727, %v660
          %v760 = vmul.f32 %v728, %v661
          %v761 = vmul.f32 %v729, %v662
          %v762 = vmul.f32 %v730, %v663
          %v763 = vadd.f32 %v731, %v747
          %v764 = vadd.f32 %v732, %v748
          %v765 = vadd.f32 %v733, %v749
          %v766 = vadd.f32 %v734, %v750
          %v767 = vadd.f32 %v735, %v751
          %v768 = vadd.f32 %v736, %v752
          %v769 = vadd.f32 %v737, %v753
          %v770 = vadd.f32 %v738, %v754
          %v771 = vadd.f32 %v739, %v755
          %v772 = vadd.f32 %v740, %v756
          %v773 = vadd.f32 %v741, %v757
          %v774 = vadd.f32 %v742, %v758
          %v775 = vadd.f32 %v743, %v759
          %v776 = vadd.f32 %v744, %v760
          %v777 = vadd.f32 %v745, %v761
          %v778 = vadd.f32 %v746, %v762
          %779 = vst [vmem:[%s361] sm:$0xff] %v763
          %780 = vst [vmem:[%s361 + $0x8] sm:$0xff] %v764
          %781 = vst [vmem:[%s361 + $0x10] sm:$0xff] %v765
          %782 = vst [vmem:[%s361 + $0x18] sm:$0xff] %v766
          %783 = vst [vmem:[%s361 + $0x20] sm:$0xff] %v767
          %784 = vst [vmem:[%s361 + $0x28] sm:$0xff] %v768
          %785 = vst [vmem:[%s361 + $0x30] sm:$0xff] %v769
          %786 = vst [vmem:[%s361 + $0x38] sm:$0xff] %v770
          %787 = vst [vmem:[%s361 + $0x40] sm:$0xff] %v771
          %788 = vst [vmem:[%s361 + $0x48] sm:$0xff] %v772
          %789 = vst [vmem:[%s361 + $0x50] sm:$0xff] %v773
          %790 = vst [vmem:[%s361 + $0x58] sm:$0xff] %v774
          %791 = vst [vmem:[%s361 + $0x60] sm:$0xff] %v775
          %792 = vst [vmem:[%s361 + $0x68] sm:$0xff] %v776
          %793 = vst [vmem:[%s361 + $0x70] sm:$0xff] %v777
          %794 = vst [vmem:[%s361 + $0x78] sm:$0xff] %v778
        $region60: #{tpu_custom_call.1} parent=35 // pred_fallthru
          _
        %s795 = sand.u32 %s164, 1
        %s796 = scalar_lea.sflag [#allocation5], %s795
        %s797 = sand.u32 %s164, 1
        %s798 = smul.addr %s797, 128
        %s799 = scalar_lea.vmem [#allocation11], %s798
        // Predicated region
        $region61: #{tpu_custom_call.1} parent=35 // pred_check
          %p800 = pneg %p174
        $region62: #{tpu_custom_call.1} parent=35 // pred_check_branch
          %802 = sbr.rel (%p800) target = $region64
        $region63: #{tpu_custom_call.1} parent=35 // pred_region
          %s803 = smul.u32 16, %s32
          %s805 = ssub.s32 2048, 2048
          %806 = vsyncadd %s796, %s805
          %s807 = smul.addr %s803, 2
          %s808 = sadd.s32 %s33, %s807
          %s809 = smul.addr %s808, 128
          %s810 = scalar_lea.hbm %s4, %s809
          %s811 = sshll.u32 %s799, 4
          %s812 = int_to_ptr.vmem [resolvable:$true] %s811
          %817 = dma.vmem_to_hbm [thread:$0]  %s812, 2048, %s810, %s796, 128, 256, 8
        $region64: #{tpu_custom_call.1} parent=35 // pred_fallthru
          _
      $region36: #{tpu_custom_call.1} parent=5 // pred_fallthru
        _
      %p818 = scmp.le.s32.totalorder 2, %s22
      // Predicated region
      $region65: #{tpu_custom_call.1} parent=5 // pred_check
        %p819 = pneg %p818
      $region66: #{tpu_custom_call.1} parent=5 // pred_check_branch
        %821 = sbr.rel (%p819) target = $region68
      $region67: #{tpu_custom_call.1} parent=5 // pred_region
        %s822 = ssub.s32 %s22, 2
        // Predicated region
        $region69: #{tpu_custom_call.1} parent=67 // pred_check
          %p823 = pneg %p180
        $region70: #{tpu_custom_call.1} parent=67 // pred_check_branch
          %825 = sbr.rel (%p823) target = $region72
        $region71: #{tpu_custom_call.1} parent=67 // pred_region
          %s826 = sand.u32 %s165, 1
          %s827 = scalar_lea.sflag [#allocation5], %s826
          %s828 = sand.u32 %s165, 1
          %s829 = smul.addr %s828, 128
          %s830 = scalar_lea.vmem [#allocation11], %s829
          %831 = dma.done %s827, 2048
        $region72: #{tpu_custom_call.1} parent=67 // pred_fallthru
          _
      $region68: #{tpu_custom_call.1} parent=5 // pred_fallthru
        _
    $region6: #{tpu_custom_call.1} parent=1 // loop_footer
      %s26 = sadd.s32 1, %s22
    $region7: #{tpu_custom_call.1} parent=1 // loop_footer_branch
      %21 = sbr.rel target = $region3
    $region8: #{tpu_custom_call.1} parent=1 // loop_exit
      _
    %832 = vsyncpa [#allocation4], 1
    %s833 = scalar_lea.sflag [#allocation4], 1
    %834 = vsyncpa %s833, 1
    %835 = vsyncpa [#allocation7], 1
    %s836 = scalar_lea.sflag [#allocation7], 1
    %837 = vsyncpa %s836, 1
    %838 = vsyncpa [#allocation10], 1
    %s839 = scalar_lea.sflag [#allocation10], 1
    %840 = vsyncpa %s839, 1
    %841 = vsyncpa [#allocation5], 1
    %s842 = scalar_lea.sflag [#allocation5], 1
    %843 = vsyncpa %s842, 1

</llo_original>
